<compile_context>
chip_gen: v5e
topology: v5e:2x2
jax: 0.10.0
libtpu: 0.0.40
codegen_flags: <defaults>
</compile_context>

<pallas_src>
import jax
import jax.numpy as jnp
from jax.experimental import pallas as pl
from jax.experimental.pallas import tpu as pltpu

LANE = 128
MAX_TILE_R = 1024       # 1024 x 128 x 4 B = 512 KiB per f32 input block
NUM_SPLITS = 2          # leading "parallel" axis (v7x megacore)
PAD_LOGIT = -1e4        # max(x,0) - x*0 + log1p(exp(-|x|)) == 0.0 exactly


def _bce_logits_kernel(x_ref, y_ref, o_ref):
    j = pl.program_id(1)

    @pl.when(j == 0)
    def _():
        o_ref[...] = jnp.zeros_like(o_ref)

    x = x_ref[...].astype(jnp.float32)
    y = y_ref[...].astype(jnp.float32)

    # Numerically stable BCE with logits:
    #   loss = max(x, 0) - x*y + log1p(exp(-|x|))
    loss = jnp.maximum(x, 0.0) - x * y + jnp.log1p(jnp.exp(-jnp.abs(x)))

    # Fold the (tile_r, 128) tile into the resident (8, 128) accumulator with
    # vreg-wise VPU adds (no per-step cross-lane reduce, no scalar RMW).
    o_ref[0] += loss.reshape(-1, 8, LANE).sum(axis=0)


def disc_loss(output, target, lamb=1.0):
    """lamb * BCEWithLogitsLoss()(output, target), mean reduction."""
    assert output.shape == target.shape
    count = output.size

    rows_needed = pl.cdiv(count, LANE)
    tile_r = min(MAX_TILE_R, pl.cdiv(rows_needed, 8) * 8)
    nb = pl.cdiv(rows_needed, tile_r)          # row-blocks of real data
    nb_half = pl.cdiv(nb, NUM_SPLITS)          # row-blocks per core split
    padded_rows = NUM_SPLITS * nb_half * tile_r
    pad = padded_rows * LANE - count

    x = output.reshape(-1)
    y = target.reshape(-1)
    # Single pad per input, no mask materialization: padded logits of -1e4
    # with target 0 contribute exactly 0 to the loss sum.
    x = jnp.pad(x, (0, pad), constant_values=PAD_LOGIT)
    y = jnp.pad(y, (0, pad), constant_values=0)
    x2 = x.reshape(padded_rows, LANE)
    y2 = y.reshape(padded_rows, LANE)

    in_spec = pl.BlockSpec((tile_r, LANE), lambda c, j: (c * nb_half + j, 0))
    out_spec = pl.BlockSpec((1, 8, LANE), lambda c, j: (c, 0, 0))

    partials = pl.pallas_call(
        _bce_logits_kernel,
        out_shape=jax.ShapeDtypeStruct((NUM_SPLITS, 8, LANE), jnp.float32),
        grid_spec=pltpu.PrefetchScalarGridSpec(
            num_scalar_prefetch=0,
            grid=(NUM_SPLITS, nb_half),
            in_specs=[in_spec, in_spec],
            out_specs=out_spec,
        ),
        compiler_params=pltpu.CompilerParams(
            dimension_semantics=("parallel", "arbitrary"),
        ),
    )(x2, y2)

    # Tiny final reduce + scaling outside the kernel.
    return (lamb / count) * jnp.sum(partials)


def _reference(output, target, lamb=1.0):
    x = output.astype(jnp.float32)
    y = target.astype(jnp.float32)
    loss = jnp.maximum(x, 0.0) - x * y + jnp.log1p(jnp.exp(-jnp.abs(x)))
    return lamb * jnp.mean(loss)


if __name__ == "__main__":
    key = jax.random.PRNGKey(0)
    k1, k2, k3, k4 = jax.random.split(key, 4)

    # Discriminator-style logits / labels (NCHW).
    output = jax.random.normal(k1, (2, 4, 16, 16), dtype=jnp.float32)
    target = jax.random.bernoulli(k2, 0.5, (2, 4, 16, 16)).astype(jnp.float32)

    lamb = 1.0
    loss = disc_loss(output, target, lamb=lamb)
    loss = jax.block_until_ready(loss)
    ref = _reference(output, target, lamb=lamb)
    assert jnp.allclose(loss, ref, rtol=1e-5, atol=1e-6), (loss, ref)

    # Ragged size (not a multiple of 8*128) exercises the padded-tail path.
    out_r = jax.random.normal(k3, (3, 5, 7), dtype=jnp.float32)
    tgt_r = jax.random.bernoulli(k4, 0.5, (3, 5, 7)).astype(jnp.float32)
    loss_r = jax.block_until_ready(disc_loss(out_r, tgt_r, lamb=0.5))
    ref_r = _reference(out_r, tgt_r, lamb=0.5)
    assert jnp.allclose(loss_r, ref_r, rtol=1e-5, atol=1e-6), (loss_r, ref_r)

    print("KERNEL_OK")
</pallas_src>

<mosaic_0001>
module attributes {stable_mosaic.version = 11 : i64} {
  func.func @_bce_logits_kernel(%arg0: i32, %arg1: i32, %arg2: memref<16x128xf32, #tpu.memory_space<vmem>>, %arg3: memref<16x128xf32, #tpu.memory_space<vmem>>, %arg4: memref<1x8x128xf32, #tpu.memory_space<vmem>>) attributes {dimension_semantics = [#tpu.dimension_semantics<parallel>, #tpu.dimension_semantics<arbitrary>], iteration_bounds = array<i64: 2, 1>, scalar_prefetch = 0 : i64, scratch_operands = 0 : i64, tpu.core_type = #tpu.core_type<tc>, window_params = [{transform_indices = @transform_0, window_bounds = array<i64: 16, 128>}, {transform_indices = @transform_1, window_bounds = array<i64: 16, 128>}, {transform_indices = @transform_2, window_bounds = array<i64: 1, 8, 128>}]} {
    %c0_i32 = arith.constant 0 : i32
    %0 = arith.cmpi eq, %arg1, %c0_i32 : i32
    %1 = arith.extui %0 : i1 to i32
    %c0_i32_0 = arith.constant 0 : i32
    %2 = arith.cmpi ne, %1, %c0_i32_0 : i32
    scf.if %2 {
      %cst_12 = arith.constant 0.000000e+00 : f32
      %23 = vector.broadcast %cst_12 : f32 to vector<1x8x128xf32>
      %c0_13 = arith.constant 0 : index
      %c0_14 = arith.constant 0 : index
      %c0_15 = arith.constant 0 : index
      %24 = vector.load %arg4[%c0_13, %c0_14, %c0_15] : memref<1x8x128xf32, #tpu.memory_space<vmem>>, vector<1x8x128xf32>
      tpu.vector_store %arg4[%c0_13, %c0_14, %c0_15], %23 {strides = array<i32>} : memref<1x8x128xf32, #tpu.memory_space<vmem>>, vector<1x8x128xf32>,
    } else {
    }
    %c0 = arith.constant 0 : index
    %c0_1 = arith.constant 0 : index
    %3 = vector.load %arg2[%c0, %c0_1] : memref<16x128xf32, #tpu.memory_space<vmem>>, vector<16x128xf32>
    %c0_2 = arith.constant 0 : index
    %c0_3 = arith.constant 0 : index
    %4 = vector.load %arg3[%c0_2, %c0_3] : memref<16x128xf32, #tpu.memory_space<vmem>>, vector<16x128xf32>
    %cst = arith.constant 0.000000e+00 : f32
    %5 = vector.broadcast %cst : f32 to vector<16x128xf32>
    %6 = arith.maximumf %3, %5 : vector<16x128xf32>
    %7 = arith.mulf %3, %4 : vector<16x128xf32>
    %8 = arith.subf %6, %7 : vector<16x128xf32>
    %9 = math.absf %3 : vector<16x128xf32>
    %cst_4 = arith.constant 0.000000e+00 : f32
    %10 = vector.broadcast %cst_4 : f32 to vector<16x128xf32>
    %11 = arith.subf %10, %9 : vector<16x128xf32>
    %12 = math.exp %11 : vector<16x128xf32>
    %13 = math.log1p %12 : vector<16x128xf32>
    %14 = arith.addf %8, %13 : vector<16x128xf32>
    %c0_5 = arith.constant 0 : index
    %c0_6 = arith.constant 0 : index
    %c0_7 = arith.constant 0 : index
    %15 = vector.load %arg4[%c0_5, %c0_6, %c0_7] : memref<1x8x128xf32, #tpu.memory_space<vmem>>, vector<1x8x128xf32>
    %16 = vector.shape_cast %15 : vector<1x8x128xf32> to vector<8x128xf32>
    %17 = vector.shape_cast %14 : vector<16x128xf32> to vector<2x8x128xf32>
    %cst_8 = arith.constant dense<0.000000e+00> : vector<8x128xf32>
    %18 = vector.multi_reduction <add>, %17, %cst_8 [0] : vector<2x8x128xf32> to vector<8x128xf32>
    %19 = arith.addf %16, %18 : vector<8x128xf32>
    %c0_9 = arith.constant 0 : index
    %c0_10 = arith.constant 0 : index
    %c0_11 = arith.constant 0 : index
    %20 = vector.load %arg4[%c0_9, %c0_10, %c0_11] : memref<1x8x128xf32, #tpu.memory_space<vmem>>, vector<1x8x128xf32>
    %21 = vector.shape_cast %20 : vector<1x8x128xf32> to vector<8x128xf32>
    %22 = vector.shape_cast %19 : vector<8x128xf32> to vector<1x8x128xf32>
    tpu.vector_store %arg4[%c0_9, %c0_10, %c0_11], %22 {strides = array<i32>} : memref<1x8x128xf32, #tpu.memory_space<vmem>>, vector<1x8x128xf32>,
    return
  }
  func.func @transform_0(%arg0: i32, %arg1: i32) -> (i32, i32) {
    %c1_i32 = arith.constant 1 : i32
    %0 = arith.muli %arg0, %c1_i32 : i32
    %1 = arith.addi %0, %arg1 : i32
    %c0_i32 = arith.constant 0 : i32
    %c0_i32_0 = arith.constant 0 : i32
    return %1, %c0_i32 : i32, i32
  }
  func.func @transform_1(%arg0: i32, %arg1: i32) -> (i32, i32) {
    %c1_i32 = arith.constant 1 : i32
    %0 = arith.muli %arg0, %c1_i32 : i32
    %1 = arith.addi %0, %arg1 : i32
    %c0_i32 = arith.constant 0 : i32
    %c0_i32_0 = arith.constant 0 : i32
    return %1, %c0_i32 : i32, i32
  }
  func.func @transform_2(%arg0: i32, %arg1: i32) -> (i32, i32, i32) {
    %c0_i32 = arith.constant 0 : i32
    %c0_i32_0 = arith.constant 0 : i32
    %c0_i32_1 = arith.constant 0 : i32
    return %arg0, %c0_i32, %c0_i32_0 : i32, i32, i32
  }
}

</mosaic_0001>

<llo_original>
// kernel: tpu_custom_call.1
$region0: #{tpu_custom_call.1}
  #allocation0 [shape = 'u32[]', space=smem, size = 0x4, offset = 0x4, fixed_abs, tag = 'smem constant byte address 0x4 - core index']
  #allocation1 [shape = 'u32[72,128]{1,0:T(1,128)}', space=vmem, size = 0x9000, scoped, tag = 'internal scratch']
  %s0 = inlined_call_operand.hbm [shape: f32[32,128], index: 0, kind: input, shape index: {}]
  %s1 = inlined_call_operand.hbm [shape: f32[32,128], index: 1, kind: input, shape index: {}]
  %s2 = inlined_call_operand.hbm [shape: f32[2,8,128], index: 2, kind: output, shape index: {}]
  %s3 = sld [smem:[#allocation0]]
  $region53: #{tpu_custom_call.1} parent=0
    _
  %s5 = ssub.s32 1, %s3
  %s6 = scalar_select 0, %s5, %s3
  $region1: #{tpu_custom_call.1} parent=0
    #allocation2 [shape = 'u8[16384]{0}', space=vmem, size = 0x4000, scoped, tag = 'input window, operand 0']
    #allocation3 [shape = 's32[2]{0}', space=sflag, size = 0x8, scoped, tag = 'scoped memory for tpu_custom_call.1']
    #allocation4 [shape = 's32[2]{0}', space=sflag, size = 0x8, scoped, tag = 'scoped memory for tpu_custom_call.1']
    #allocation5 [shape = 'u8[16384]{0}', space=vmem, size = 0x4000, scoped, tag = 'input window, operand 1']
    #allocation6 [shape = 's32[2]{0}', space=sflag, size = 0x8, scoped, tag = 'scoped memory for tpu_custom_call.1']
    #allocation7 [shape = 'u8[8192]{0}', space=vmem, size = 0x2000, scoped, tag = 'output window, operand 0']
    %7 = vsyncpa [#allocation3], 0
    %s8 = scalar_lea.sflag [#allocation3], 1
    %9 = vsyncpa %s8, 0
    %10 = vsyncpa [#allocation6], 0
    %s11 = scalar_lea.sflag [#allocation6], 1
    %12 = vsyncpa %s11, 0
    %13 = vsyncpa [#allocation4], 0
    %s14 = scalar_lea.sflag [#allocation4], 1
    %15 = vsyncpa %s14, 0
    loop: start=0, step=1, limit=4
    $region2: #{tpu_custom_call.1} parent=1 // loop_pre_header
      _
    $region3: #{tpu_custom_call.1} parent=1 // loop_header
      %s17 = sphi 0, %s21
      %p18 = scmp.ge.s32.totalorder %s17, 4
      %s24 = sphi 0, %s36
      %s25 = sphi 0, %s32
      %s26 = sphi 0, %s24
      %s27 = sphi 0, %s25
      %s28 = sphi 0, %s26
      %s29 = sphi 0, %s27
      %s41 = sphi 0, %s43
      %s44 = sphi 0, %s41
      %s45 = sphi 0, %s44
      %s61 = sphi 0, %s45
      %s69 = sphi 0, %s71
      %s72 = sphi 0, %s69
      %s73 = sphi 0, %s72
      %s89 = sphi 0, %s73
      %s95 = sphi 0, %s97
      %s98 = sphi 0, %s95
      %s99 = sphi 0, %s98
      %s115 = sphi 0, %s99
    $region4: #{tpu_custom_call.1} parent=1 // loop_header_branch
      %20 = sbr.rel (%p18) target = $region8
    $region5: #{tpu_custom_call.1} parent=1 // loop_body
      %s22 = ssub.s32 %s17, 1
      %s23 = ssub.s32 %s17, 2
      %s30 = sadd.s32 1, %s25
      %p31 = scmp.ge.s32.totalorder %s30, 1
      %s32 = scalar_select %p31, 0, %s30
      %s33 = sadd.s32 1, %s24
      %s34 = scalar_select %p31, %s33, %s24
      %p35 = scmp.ge.s32.totalorder %s34, 2
      %s36 = scalar_select %p35, 0, %s34
      %s37 = sadd.s32 %s24, %s25
      %s38 = sadd.s32 %s36, %s32
      %s39 = ssub.s32 %s37, %s38
      %p40 = scmp.eq.s32.totalorder %s39, 0
      %s42 = sadd.s32 %s41, 1
      %s43 = scalar_select %p40, %s41, %s42
      %p46 = pneg %p40
      %p47 = scmp.eq.s32.totalorder %s17, 1
      %p48 = por %p46, %p47
      %p49 = scmp.ne.s32.totalorder %s41, %s44
      %p50 = scmp.eq.s32.totalorder %s17, 0
      %p51 = por %p49, %p50
      %p52 = scmp.ne.s32.totalorder %s41, %s44
      %p53 = scmp.eq.s32.totalorder %s22, 1
      %p54 = por %p52, %p53
      %p55 = scmp.ne.s32.totalorder %s44, %s45
      %p56 = scmp.eq.s32.totalorder %s22, 0
      %p57 = por %p55, %p56
      %p58 = scmp.ne.s32.totalorder %s44, %s45
      %p59 = scmp.eq.s32.totalorder %s23, 1
      %p60 = por %p58, %p59
      %p62 = scmp.ne.s32.totalorder %s45, %s61
      %p63 = scmp.eq.s32.totalorder %s23, 0
      %p64 = por %p62, %p63
      %s65 = sadd.s32 %s24, %s25
      %s66 = sadd.s32 %s36, %s32
      %s67 = ssub.s32 %s65, %s66
      %p68 = scmp.eq.s32.totalorder %s67, 0
      %s70 = sadd.s32 %s69, 1
      %s71 = scalar_select %p68, %s69, %s70
      %p74 = pneg %p68
      %p75 = scmp.eq.s32.totalorder %s17, 1
      %p76 = por %p74, %p75
      %p77 = scmp.ne.s32.totalorder %s69, %s72
      %p78 = scmp.eq.s32.totalorder %s17, 0
      %p79 = por %p77, %p78
      %p80 = scmp.ne.s32.totalorder %s69, %s72
      %p81 = scmp.eq.s32.totalorder %s22, 1
      %p82 = por %p80, %p81
      %p83 = scmp.ne.s32.totalorder %s72, %s73
      %p84 = scmp.eq.s32.totalorder %s22, 0
      %p85 = por %p83, %p84
      %p86 = scmp.ne.s32.totalorder %s72, %s73
      %p87 = scmp.eq.s32.totalorder %s23, 1
      %p88 = por %p86, %p87
      %p90 = scmp.ne.s32.totalorder %s73, %s89
      %p91 = scmp.eq.s32.totalorder %s23, 0
      %p92 = por %p90, %p91
      %s93 = ssub.s32 %s24, %s36
      %p94 = scmp.eq.s32.totalorder %s93, 0
      %s96 = sadd.s32 %s95, 1
      %s97 = scalar_select %p94, %s95, %s96
      %p100 = pneg %p94
      %p101 = scmp.eq.s32.totalorder %s17, 1
      %p102 = por %p100, %p101
      %p103 = scmp.ne.s32.totalorder %s95, %s98
      %p104 = scmp.eq.s32.totalorder %s17, 0
      %p105 = por %p103, %p104
      %p106 = scmp.ne.s32.totalorder %s95, %s98
      %p107 = scmp.eq.s32.totalorder %s22, 1
      %p108 = por %p106, %p107
      %p109 = scmp.ne.s32.totalorder %s98, %s99
      %p110 = scmp.eq.s32.totalorder %s22, 0
      %p111 = por %p109, %p110
      %p112 = scmp.ne.s32.totalorder %s98, %s99
      %p113 = scmp.eq.s32.totalorder %s23, 1
      %p114 = por %p112, %p113
      %p116 = scmp.ne.s32.totalorder %s99, %s115
      %p117 = scmp.eq.s32.totalorder %s23, 0
      %p118 = por %p116, %p117
      %p119 = scmp.le.s32.totalorder 1, %s17
      %p120 = scmp.lt.s32.totalorder %s17, 3
      %p121 = pnand %p119, %p120
      %p122 = pneg %p121
      // Predicated region
      $region9: #{tpu_custom_call.1} parent=5 // pred_check
        _
      $region10: #{tpu_custom_call.1} parent=5 // pred_check_branch
        %124 = sbr.rel (%p121) target = $region12
      $region11: #{tpu_custom_call.1} parent=5 // pred_region
        %s125 = ssub.s32 %s17, 1
      $region12: #{tpu_custom_call.1} parent=5 // pred_fallthru
        _
      %p126 = scmp.lt.s32.totalorder %s17, 2
      // Predicated region
      $region13: #{tpu_custom_call.1} parent=5 // pred_check
        %p127 = pneg %p126
      $region14: #{tpu_custom_call.1} parent=5 // pred_check_branch
        %129 = sbr.rel (%p127) target = $region16
      $region15: #{tpu_custom_call.1} parent=5 // pred_region
        // Predicated region
        $region17: #{tpu_custom_call.1} parent=15 // pred_check
          %p130 = pneg %p51
        $region18: #{tpu_custom_call.1} parent=15 // pred_check_branch
          %132 = sbr.rel (%p130) target = $region20
        $region19: #{tpu_custom_call.1} parent=15 // pred_region
          %s133 = sand.u32 %s41, 1
          %s134 = scalar_lea.sflag [#allocation3], %s133
          %s135 = sand.u32 %s41, 1
          %s136 = smul.addr %s135, 16
          %s137 = scalar_lea.vmem [#allocation2], %s136
          %s138 = sadd.s32 %s24, %s25
          %s139 = smul.u32 2, %s138
          %141 = vsyncadd %s134, 0
          %s142 = smul.addr %s139, 8
          %s143 = scalar_lea.hbm %s0, %s142
          %s144 = sshll.u32 %s143, 4
          %s145 = int_to_ptr.hbm [resolvable:$true] %s144
          %s146 = sshll.u32 %s137, 4
          %s147 = int_to_ptr.vmem [resolvable:$true] %s146
          %152 = dma.hbm_to_vmem [thread:$0]  %s145, 256, %s147, %s134, 128, 128, 8
        $region20: #{tpu_custom_call.1} parent=15 // pred_fallthru
          _
        // Predicated region
        $region21: #{tpu_custom_call.1} parent=15 // pred_check
          %p153 = pneg %p79
        $region22: #{tpu_custom_call.1} parent=15 // pred_check_branch
          %155 = sbr.rel (%p153) target = $region24
        $region23: #{tpu_custom_call.1} parent=15 // pred_region
          %s156 = sand.u32 %s69, 1
          %s157 = scalar_lea.sflag [#allocation6], %s156
          %s158 = sand.u32 %s69, 1
          %s159 = smul.addr %s158, 16
          %s160 = scalar_lea.vmem [#allocation5], %s159
          %s161 = sadd.s32 %s24, %s25
          %s162 = smul.u32 2, %s161
          %164 = vsyncadd %s157, 0
          %s165 = smul.addr %s162, 8
          %s166 = scalar_lea.hbm %s1, %s165
          %s167 = sshll.u32 %s166, 4
          %s168 = int_to_ptr.hbm [resolvable:$true] %s167
          %s169 = sshll.u32 %s160, 4
          %s170 = int_to_ptr.vmem [resolvable:$true] %s169
          %175 = dma.hbm_to_vmem [thread:$0]  %s168, 256, %s170, %s157, 128, 128, 8
        $region24: #{tpu_custom_call.1} parent=15 // pred_fallthru
          _
      $region16: #{tpu_custom_call.1} parent=5 // pred_fallthru
        _
      %p176 = scmp.le.s32.totalorder 1, %s17
      %p177 = scmp.lt.s32.totalorder %s17, 3
      %p178 = pnand %p176, %p177
      %p179 = pneg %p178
      // Predicated region
      $region25: #{tpu_custom_call.1} parent=5 // pred_check
        _
      $region26: #{tpu_custom_call.1} parent=5 // pred_check_branch
        %181 = sbr.rel (%p178) target = $region28
      $region27: #{tpu_custom_call.1} parent=5 // pred_region
        %s182 = ssub.s32 %s17, 1
        %s183 = sand.u32 %s44, 1
        %s184 = scalar_lea.sflag [#allocation3], %s183
        %s185 = sand.u32 %s44, 1
        %s186 = smul.addr %s185, 16
        %s187 = scalar_lea.vmem [#allocation2], %s186
        // Predicated region
        $region29: #{tpu_custom_call.1} parent=27 // pred_check
          %p188 = pneg %p57
        $region30: #{tpu_custom_call.1} parent=27 // pred_check_branch
          %190 = sbr.rel (%p188) target = $region32
        $region31: #{tpu_custom_call.1} parent=27 // pred_region
          %192 = dma.done %s184, 256
        $region32: #{tpu_custom_call.1} parent=27 // pred_fallthru
          _
        %s193 = sand.u32 %s72, 1
        %s194 = scalar_lea.sflag [#allocation6], %s193
        %s195 = sand.u32 %s72, 1
        %s196 = smul.addr %s195, 16
        %s197 = scalar_lea.vmem [#allocation5], %s196
        // Predicated region
        $region33: #{tpu_custom_call.1} parent=27 // pred_check
          %p198 = pneg %p85
        $region34: #{tpu_custom_call.1} parent=27 // pred_check_branch
          %200 = sbr.rel (%p198) target = $region36
        $region35: #{tpu_custom_call.1} parent=27 // pred_region
          %202 = dma.done %s194, 256
        $region36: #{tpu_custom_call.1} parent=27 // pred_fallthru
          _
        %s203 = sand.u32 %s44, 1
        %s204 = scalar_lea.sflag [#allocation3], %s203
        %s205 = sand.u32 %s44, 1
        %s206 = smul.addr %s205, 16
        %s207 = scalar_lea.vmem [#allocation2], %s206
        %p208 = pneg %p57
        %p209 = pneg %p54
        %s210 = sand.u32 %s72, 1
        %s211 = scalar_lea.sflag [#allocation6], %s210
        %s212 = sand.u32 %s72, 1
        %s213 = smul.addr %s212, 16
        %s214 = scalar_lea.vmem [#allocation5], %s213
        %p215 = pneg %p85
        %p216 = pneg %p82
        %p217 = pneg %p111
        %p218 = pneg %p108
        %s219 = sand.u32 %s98, 1
        %s220 = scalar_lea.sflag [#allocation4], %s219
        %s221 = sand.u32 %s98, 1
        %s222 = smul.addr %s221, 8
        %s223 = scalar_lea.vmem [#allocation7], %s222
        %s224 = sadd.s32 %s26, %s27
        %s225 = smul.u32 2, %s224
        %s226 = sadd.s32 %s26, %s27
        %s227 = smul.u32 2, %s226
        %p228 = scmp.eq.s32.totalorder %s27, 0
        // Predicated region
        $region37: #{tpu_custom_call.1} parent=27 // pred_check
          %p229 = pneg %p228
        $region38: #{tpu_custom_call.1} parent=27 // pred_check_branch
          %231 = sbr.rel (%p229) target = $region40
        $region39: #{tpu_custom_call.1} parent=27 // pred_region
          %232 = vst [vmem:[%s223] sm:$0xff] 0.0
        $region40: #{tpu_custom_call.1} parent=27 // pred_fallthru
          _
        %v233 = vld [vmem:[%s187] sm:$0xff]
        %v234 = vld [vmem:[%s187 + $0x8] sm:$0xff]
        %v235 = vld [vmem:[%s197] sm:$0xff]
        %v236 = vld [vmem:[%s197 + $0x8] sm:$0xff]
        %v237 = vmax.f32 %v233, 0.0
        %v238 = vmax.f32 %v234, 0.0
        %v239 = vmul.f32 %v233, %v235
        %v240 = vmul.f32 %v234, %v236
        %v241 = vsub.f32 %v237, %v239
        %v242 = vsub.f32 %v238, %v240
        %v243 = vand.u32 2147483647, %v233
        %v244 = vand.u32 2147483647, %v234
        %v245 = vsub.f32 0.0, %v243
        %v246 = vsub.f32 0.0, %v244
        %v247 = vmul.f32 %v245, 1.442695
        %v248 = vpow.pop %v247
        %v249 = vmul.f32 %v246, 1.442695
        %v250 = vpow.pop %v249
        %v251 = vadd.f32 %v248, 1.0
        %v252 = vlog2.pop %v251
        %v253 = vmul.f32 %v252, 0.6931472
        %v254 = vmul.f32 -0.5, %v248
        %v255 = vadd.f32 %v254, 1.0
        %v256 = vmul.f32 %v255, %v248
        %v257 = vand.u32 2147483647, %v248
        %vm258 = vcmp.lt.f32.partialorder %v257, 0.0004427343
        %v259 = vsel %vm258, %v256, %v253
        %v260 = vadd.f32 %v250, 1.0
        %v261 = vlog2.pop %v260
        %v262 = vmul.f32 %v261, 0.6931472
        %v263 = vmul.f32 -0.5, %v250
        %v264 = vadd.f32 %v263, 1.0
        %v265 = vmul.f32 %v264, %v250
        %v266 = vand.u32 2147483647, %v250
        %vm267 = vcmp.lt.f32.partialorder %v266, 0.0004427343
        %v268 = vsel %vm267, %v265, %v262
        %v269 = vadd.f32 %v241, %v259
        %v270 = vadd.f32 %v242, %v268
        %v271 = vld [vmem:[%s223] sm:$0xff]
        %v272 = vadd.f32 %v269, %v270
        %v273 = vadd.f32 %v271, %v272
        %274 = vst [vmem:[%s223] sm:$0xff] %v273
        %s275 = sand.u32 %s98, 1
        %s276 = scalar_lea.sflag [#allocation4], %s275
        %s277 = sand.u32 %s98, 1
        %s278 = smul.addr %s277, 8
        %s279 = scalar_lea.vmem [#allocation7], %s278
        // Predicated region
        $region41: #{tpu_custom_call.1} parent=27 // pred_check
          %p280 = pneg %p108
        $region42: #{tpu_custom_call.1} parent=27 // pred_check_branch
          %282 = sbr.rel (%p280) target = $region44
        $region43: #{tpu_custom_call.1} parent=27 // pred_region
          %284 = vsyncadd %s276, 0
          %s285 = smul.addr %s26, 8
          %s286 = scalar_lea.hbm %s2, %s285
          %s288 = sshll.u32 %s279, 4
          %s289 = int_to_ptr.vmem [resolvable:$true] %s288
          %s290 = sshll.u32 %s286, 4
          %s291 = int_to_ptr.hbm [resolvable:$true] %s290
          %293 = dma.vmem_to_hbm [thread:$0]  %s289, 128, %s291, %s276
        $region44: #{tpu_custom_call.1} parent=27 // pred_fallthru
          _
      $region28: #{tpu_custom_call.1} parent=5 // pred_fallthru
        _
      %p294 = scmp.le.s32.totalorder 2, %s17
      // Predicated region
      $region45: #{tpu_custom_call.1} parent=5 // pred_check
        %p295 = pneg %p294
      $region46: #{tpu_custom_call.1} parent=5 // pred_check_branch
        %297 = sbr.rel (%p295) target = $region48
      $region47: #{tpu_custom_call.1} parent=5 // pred_region
        %s298 = ssub.s32 %s17, 2
        // Predicated region
        $region49: #{tpu_custom_call.1} parent=47 // pred_check
          %p299 = pneg %p114
        $region50: #{tpu_custom_call.1} parent=47 // pred_check_branch
          %301 = sbr.rel (%p299) target = $region52
        $region51: #{tpu_custom_call.1} parent=47 // pred_region
          %s302 = sand.u32 %s99, 1
          %s303 = scalar_lea.sflag [#allocation4], %s302
          %s304 = sand.u32 %s99, 1
          %s305 = smul.addr %s304, 8
          %s306 = scalar_lea.vmem [#allocation7], %s305
          %308 = dma.done %s303, 128
        $region52: #{tpu_custom_call.1} parent=47 // pred_fallthru
          _
      $region48: #{tpu_custom_call.1} parent=5 // pred_fallthru
        _
    $region6: #{tpu_custom_call.1} parent=1 // loop_footer
      %s21 = sadd.s32 1, %s17
    $region7: #{tpu_custom_call.1} parent=1 // loop_footer_branch
      %16 = sbr.rel target = $region3
    $region8: #{tpu_custom_call.1} parent=1 // loop_exit
      _
    %309 = vsyncpa [#allocation3], 1
    %s310 = scalar_lea.sflag [#allocation3], 1
    %311 = vsyncpa %s310, 1
    %312 = vsyncpa [#allocation6], 1
    %s313 = scalar_lea.sflag [#allocation6], 1
    %314 = vsyncpa %s313, 1
    %315 = vsyncpa [#allocation4], 1
    %s316 = scalar_lea.sflag [#allocation4], 1
    %317 = vsyncpa %s316, 1

</llo_original>
